<compile_context>
chip_gen: v6e
topology: v6e:2x2x1
jax: 0.10.0
libtpu: 0.0.40
codegen_flags: <defaults>
</compile_context>

<pallas_src>
import jax
import jax.numpy as jnp
from jax.experimental import pallas as pl
from jax.experimental.pallas import tpu as pltpu

BAR_X = 4.0  # Bar(4.0)
BAZ_X = 2.0  # Baz(2.0)

LANES = 512           # lane-dense last dim (multiple of 128) -> unmasked wide stores
MAX_TILE_ROWS = 1024  # 1024 x 512 x 4B = 2 MiB per f32 buffer per pipeline slot


def _foo_kernel(a_ref, b_ref, o_ref):
    a = a_ref[...]
    b = b_ref[...]
    # Bit-faithful to Foo.forward: Baz(Bar(a, b), b) = (a * b + 4.0) + b * 2.0
    o_ref[...] = (a * b + BAR_X) + b * BAZ_X


def _sublane_multiple(dtype) -> int:
    # Sub-32-bit dtypes pack rows along sublanes: f32 -> 8, bf16 -> 16, int8/fp8 -> 32.
    itemsize = jnp.dtype(dtype).itemsize
    return max(8, 32 // max(1, itemsize))


def _foo_pallas_2d(a2: jax.Array, b2: jax.Array) -> jax.Array:
    """Fused elementwise kernel over a lane-dense [rows, LANES] slab (no padding)."""
    rows, cols = a2.shape
    itemsize = jnp.dtype(a2.dtype).itemsize
    sub = _sublane_multiple(a2.dtype)

    if rows <= MAX_TILE_ROWS:
        # Small-array fast path: one full-array block (block == array dims is
        # exempt from the (8,128) divisibility rule), grid of 1.
        tile_rows = rows
        grid = (1,)
    else:
        tile_rows = (MAX_TILE_ROWS // sub) * sub
        # Ragged last block (if any) is masked by Pallas: at most one masked
        # store per call, far cheaper than wrapper-side pad + slice.
        grid = (pl.cdiv(rows, tile_rows),)

    n = rows * cols
    cost = pl.CostEstimate(
        flops=3 * n,
        transcendentals=0,
        bytes_accessed=3 * n * itemsize,  # read a, read b, write out
    )

    # TODO(synk): on v7x, switch the row-tile axis to pltpu.CORE_PARALLEL (or
    # pl.core_map over a 2-TensorCore mesh) so both TCs stream half the rows.
    return pl.pallas_call(
        _foo_kernel,
        out_shape=jax.ShapeDtypeStruct((rows, cols), a2.dtype),
        grid_spec=pl.GridSpec(
            grid=grid,
            in_specs=[
                pl.BlockSpec((tile_rows, cols), lambda i: (i, 0)),
                pl.BlockSpec((tile_rows, cols), lambda i: (i, 0)),
            ],
            out_specs=pl.BlockSpec((tile_rows, cols), lambda i: (i, 0)),
        ),
        compiler_params=pltpu.CompilerParams(
            dimension_semantics=("parallel",),
        ),
        cost_estimate=cost,
    )(a2, b2)


def foo_forward(a: jax.Array, b: jax.Array) -> jax.Array:
    assert a.shape == b.shape and a.dtype == b.dtype
    orig_shape = a.shape
    n = a.size
    if n == 0:
        return a

    flat_a = a.reshape(-1)
    flat_b = b.reshape(-1)

    n_aligned = (n // LANES) * LANES

    if n_aligned == n:
        # Common case: reshape to [rows, LANES] is a free view -> zero extra
        # HBM traffic outside the kernel.
        out2 = _foo_pallas_2d(
            flat_a.reshape(-1, LANES), flat_b.reshape(-1, LANES)
        )
        return out2.reshape(orig_shape)

    # Ragged size: kernel handles the LANES-aligned prefix, the <LANES-element
    # tail is a tiny fused XLA expression (no full-tensor pad / slice copies).
    parts = []
    if n_aligned:
        prefix = _foo_pallas_2d(
            flat_a[:n_aligned].reshape(-1, LANES),
            flat_b[:n_aligned].reshape(-1, LANES),
        ).reshape(-1)
        parts.append(prefix)
    ta = flat_a[n_aligned:]
    tb = flat_b[n_aligned:]
    parts.append((ta * tb + BAR_X) + tb * BAZ_X)
    return jnp.concatenate(parts).reshape(orig_shape)


if __name__ == "__main__":
    key = jax.random.PRNGKey(0)
    ka, kb = jax.random.split(key)
    # Small NCHW inputs consistent with an elementwise forward.
    shape = (2, 4, 16, 16)
    a = jax.random.normal(ka, shape, dtype=jnp.float32)
    b = jax.random.normal(kb, shape, dtype=jnp.float32)

    out = foo_forward(a, b)
    jax.block_until_ready(out)

    # Reference check in plain JAX (same expression as the PyTorch module).
    ref = (a * b + BAR_X) + b * BAZ_X
    assert jnp.allclose(out, ref, atol=1e-6, rtol=1e-6), "mismatch vs reference"

    print("KERNEL_OK")
</pallas_src>

<mosaic_0001>
module attributes {stable_mosaic.version = 11 : i64} {
  func.func @_foo_kernel(%arg0: i32, %arg1: memref<4x512xf32, #tpu.memory_space<vmem>>, %arg2: memref<4x512xf32, #tpu.memory_space<vmem>>, %arg3: memref<4x512xf32, #tpu.memory_space<vmem>>) attributes {dimension_semantics = [#tpu.dimension_semantics<parallel>], iteration_bounds = array<i64: 1>, scalar_prefetch = 0 : i64, scratch_operands = 0 : i64, tpu.core_type = #tpu.core_type<tc>, window_params = [{transform_indices = @transform_0, window_bounds = array<i64: 4, 512>}, {transform_indices = @transform_1, window_bounds = array<i64: 4, 512>}, {transform_indices = @transform_2, window_bounds = array<i64: 4, 512>}]} {
    %c0 = arith.constant 0 : index
    %c0_0 = arith.constant 0 : index
    %0 = vector.load %arg1[%c0, %c0_0] : memref<4x512xf32, #tpu.memory_space<vmem>>, vector<4x512xf32>
    %c0_1 = arith.constant 0 : index
    %c0_2 = arith.constant 0 : index
    %1 = vector.load %arg2[%c0_1, %c0_2] : memref<4x512xf32, #tpu.memory_space<vmem>>, vector<4x512xf32>
    %2 = arith.mulf %0, %1 : vector<4x512xf32>
    %cst = arith.constant 4.000000e+00 : f32
    %3 = vector.broadcast %cst : f32 to vector<4x512xf32>
    %4 = arith.addf %2, %3 : vector<4x512xf32>
    %cst_3 = arith.constant 2.000000e+00 : f32
    %5 = vector.broadcast %cst_3 : f32 to vector<4x512xf32>
    %6 = arith.mulf %1, %5 : vector<4x512xf32>
    %7 = arith.addf %4, %6 : vector<4x512xf32>
    %c0_4 = arith.constant 0 : index
    %c0_5 = arith.constant 0 : index
    %8 = vector.load %arg3[%c0_4, %c0_5] : memref<4x512xf32, #tpu.memory_space<vmem>>, vector<4x512xf32>
    tpu.vector_store %arg3[%c0_4, %c0_5], %7 {strides = array<i32>} : memref<4x512xf32, #tpu.memory_space<vmem>>, vector<4x512xf32>,
    return
  }
  func.func @transform_0(%arg0: i32) -> (i32, i32) {
    %c0_i32 = arith.constant 0 : i32
    %c0_i32_0 = arith.constant 0 : i32
    return %arg0, %c0_i32 : i32, i32
  }
  func.func @transform_1(%arg0: i32) -> (i32, i32) {
    %c0_i32 = arith.constant 0 : i32
    %c0_i32_0 = arith.constant 0 : i32
    return %arg0, %c0_i32 : i32, i32
  }
  func.func @transform_2(%arg0: i32) -> (i32, i32) {
    %c0_i32 = arith.constant 0 : i32
    %c0_i32_0 = arith.constant 0 : i32
    return %arg0, %c0_i32 : i32, i32
  }
}

</mosaic_0001>

<llo_original>
// kernel: tpu_custom_call.1
$region0: #{tpu_custom_call.1}
  #allocation0 [shape = 'u32[]', space=smem, size = 0x4, offset = 0x4, fixed_abs, tag = 'smem constant byte address 0x4 - core index']
  #allocation1 [shape = 'u32[144,128]{1,0:T(1,128)}', space=vmem, size = 0x12000, scoped, tag = 'internal scratch']
  %s0 = inlined_call_operand.hbm [shape: f32[4,512], index: 0, kind: input, shape index: {}]
  %s1 = inlined_call_operand.hbm [shape: f32[4,512], index: 1, kind: input, shape index: {}]
  %s2 = inlined_call_operand.hbm [shape: f32[4,512], index: 2, kind: output, shape index: {}]
  %s3 = sld [smem:[#allocation0]]
  $region26: #{tpu_custom_call.1} parent=0
    _
  %s5 = ssub.s32 1, %s3
  %s6 = scalar_select 0, %s5, %s3
  $region1: #{tpu_custom_call.1} parent=0
    #allocation2 [shape = 'u8[8192]{0}', space=vmem, size = 0x2000, scoped, tag = 'input window, operand 0, single buffered']
    #allocation3 [shape = 's32[1]{0}', space=sflag, size = 0x4, scoped, tag = 'scoped memory for tpu_custom_call.1']
    #allocation4 [shape = 's32[1]{0}', space=sflag, size = 0x4, scoped, tag = 'scoped memory for tpu_custom_call.1']
    #allocation5 [shape = 'u8[8192]{0}', space=vmem, size = 0x2000, scoped, tag = 'input window, operand 1, single buffered']
    #allocation6 [shape = 's32[1]{0}', space=sflag, size = 0x4, scoped, tag = 'scoped memory for tpu_custom_call.1']
    #allocation7 [shape = 'u8[8192]{0}', space=vmem, size = 0x2000, scoped, tag = 'output window, operand 0, single buffered']
    %7 = vsyncpa [#allocation3], 0
    %8 = vsyncpa [#allocation6], 0
    %9 = vsyncpa [#allocation4], 0
    // Predicated region
    $region2: #{tpu_custom_call.1} parent=1 // pred_check
      _
    $region3: #{tpu_custom_call.1} parent=1 // pred_check_branch
      %11 = sbr.rel (0) target = $region5
    $region4: #{tpu_custom_call.1} parent=1 // pred_region
      %s13 = ssub.s32 256, 256
      %14 = vsyncadd [#allocation3], %s13
      %s16 = sshll.u32 [#allocation2], 4
      %s17 = int_to_ptr.vmem [resolvable:$true] %s16
      %19 = dma.hbm_to_vmem [thread:$0]  %s0, 256, %s17, [#allocation3]
    $region5: #{tpu_custom_call.1} parent=1 // pred_fallthru
      _
    // Predicated region
    $region6: #{tpu_custom_call.1} parent=1 // pred_check
      _
    $region7: #{tpu_custom_call.1} parent=1 // pred_check_branch
      %21 = sbr.rel (0) target = $region9
    $region8: #{tpu_custom_call.1} parent=1 // pred_region
      %s23 = ssub.s32 256, 256
      %24 = vsyncadd [#allocation6], %s23
      %s26 = sshll.u32 [#allocation5], 4
      %s27 = int_to_ptr.vmem [resolvable:$true] %s26
      %29 = dma.hbm_to_vmem [thread:$0]  %s1, 256, %s27, [#allocation6]
    $region9: #{tpu_custom_call.1} parent=1 // pred_fallthru
      _
    // Predicated region
    $region10: #{tpu_custom_call.1} parent=1 // pred_check
      _
    $region11: #{tpu_custom_call.1} parent=1 // pred_check_branch
      %31 = sbr.rel (0) target = $region13
    $region12: #{tpu_custom_call.1} parent=1 // pred_region
      %32 = dma.done [#allocation3], 256
    $region13: #{tpu_custom_call.1} parent=1 // pred_fallthru
      _
    // Predicated region
    $region14: #{tpu_custom_call.1} parent=1 // pred_check
      _
    $region15: #{tpu_custom_call.1} parent=1 // pred_check_branch
      %34 = sbr.rel (0) target = $region17
    $region16: #{tpu_custom_call.1} parent=1 // pred_region
      %35 = dma.done [#allocation6], 256
    $region17: #{tpu_custom_call.1} parent=1 // pred_fallthru
      _
    %v36 = vld [vmem:[#allocation2] sm:$0xff]
    %v37 = vld [vmem:[#allocation2 + $0x8] sm:$0xff]
    %v38 = vld [vmem:[#allocation5] sm:$0xff]
    %v39 = vld [vmem:[#allocation5 + $0x8] sm:$0xff]
    %v40 = vmul.f32 %v36, %v38
    %v41 = vmul.f32 %v37, %v39
    %v42 = vadd.f32 %v40, 4.0
    %v43 = vadd.f32 %v41, 4.0
    %v44 = vmul.f32 %v38, 2.0
    %v45 = vmul.f32 %v39, 2.0
    %v46 = vadd.f32 %v42, %v44
    %v47 = vadd.f32 %v43, %v45
    %48 = vst [vmem:[#allocation7] sm:$0xff] %v46
    %49 = vst [vmem:[#allocation7 + $0x8] sm:$0xff] %v47
    // Predicated region
    $region18: #{tpu_custom_call.1} parent=1 // pred_check
      _
    $region19: #{tpu_custom_call.1} parent=1 // pred_check_branch
      %51 = sbr.rel (0) target = $region21
    $region20: #{tpu_custom_call.1} parent=1 // pred_region
      %s53 = ssub.s32 256, 256
      %54 = vsyncadd [#allocation4], %s53
      %s56 = sshll.u32 [#allocation7], 4
      %s57 = int_to_ptr.vmem [resolvable:$true] %s56
      %59 = dma.vmem_to_hbm [thread:$0]  %s57, 256, %s2, [#allocation4]
    $region21: #{tpu_custom_call.1} parent=1 // pred_fallthru
      _
    // Predicated region
    $region22: #{tpu_custom_call.1} parent=1 // pred_check
      _
    $region23: #{tpu_custom_call.1} parent=1 // pred_check_branch
      %61 = sbr.rel (0) target = $region25
    $region24: #{tpu_custom_call.1} parent=1 // pred_region
      %62 = dma.done [#allocation4], 256
    $region25: #{tpu_custom_call.1} parent=1 // pred_fallthru
      _
    %63 = vsyncpa [#allocation3], 1
    %64 = vsyncpa [#allocation6], 1
    %65 = vsyncpa [#allocation4], 1

</llo_original>
